<compile_context>
chip_gen: v5e
topology: v5e:2x2
jax: 0.10.0
libtpu: 0.0.40
codegen_flags: <defaults>
</compile_context>

<pallas_src>
import jax
import jax.numpy as jnp
from jax.experimental import pallas as pl
from jax.experimental.pallas import tpu as pltpu


def bert_pooler_kernel(x_ref, w_ref, b_ref, o_ref):
    # x_ref: (TM, H) streamed tile
    # w_ref: (H, H) pre-transposed weight (resident in VMEM), so y = x @ w
    # b_ref: (1, H)  bias (resident in VMEM)
    y = jnp.dot(x_ref[...], w_ref[...], preferred_element_type=jnp.float32)
    y = y + b_ref[...].astype(jnp.float32)
    o_ref[...] = jnp.tanh(y).astype(o_ref.dtype)


def bert_pooler(x, weight, bias, *, tm=512, use_bf16_matmul=False):
    """BertPooler forward: tanh(x @ weight.T + bias).

    x: (..., H); weight: (H, H) torch nn.Linear weight; bias: (H,).
    """
    orig_shape = x.shape
    H = weight.shape[-1]
    x2d = x.reshape(-1, H)
    M = x2d.shape[0]
    out_dtype = x.dtype

    # Pre-transpose the weight once on the host side; the kernel never does w.T.
    wT = jnp.asarray(weight).T
    b2d = jnp.asarray(bias).reshape(1, H)

    if use_bf16_matmul:
        # bf16 MXU operands, f32 accumulation (v6e/v7x sweet spot).
        x2d = x2d.astype(jnp.bfloat16)
        wT = wT.astype(jnp.bfloat16)

    # M tile: multiple of 8 (sublane), capped so that
    #   2 buffers * (TM, H) input + 2 buffers * (TM, H) output + resident (H, H) weight
    # stays well under the scoped-VMEM default on v5e/v6e/v7x (e.g. H=1024 f32,
    # TM=512 -> ~12 MiB total).
    m_pad8 = ((M + 7) // 8) * 8
    TM = min(tm, m_pad8)
    M_pad = ((m_pad8 + TM - 1) // TM) * TM
    if M_pad != M:
        x2d = jnp.pad(x2d, ((0, M_pad - M), (0, 0)))
    grid_m = M_pad // TM

    bytes_accessed = (
        M_pad * H * x2d.dtype.itemsize          # input
        + H * H * wT.dtype.itemsize             # weight (resident, fetched once)
        + H * b2d.dtype.itemsize                # bias
        + M_pad * H * jnp.dtype(out_dtype).itemsize  # output
    )
    cost = pl.CostEstimate(
        flops=2 * M_pad * H * H,
        transcendentals=M_pad * H,
        bytes_accessed=bytes_accessed,
    )

    out = pl.pallas_call(
        bert_pooler_kernel,
        out_shape=jax.ShapeDtypeStruct((M_pad, H), out_dtype),
        grid_spec=pltpu.PrefetchScalarGridSpec(
            num_scalar_prefetch=0,
            grid=(grid_m,),
            in_specs=[
                pl.BlockSpec((TM, H), lambda i: (i, 0)),   # x: streamed / double-buffered
                pl.BlockSpec((H, H), lambda i: (0, 0)),    # weight: resident
                pl.BlockSpec((1, H), lambda i: (0, 0)),    # bias: resident
            ],
            out_specs=pl.BlockSpec((TM, H), lambda i: (i, 0)),
        ),
        compiler_params=pltpu.CompilerParams(
            # Independent M tiles -> shard across TensorCores on v7x megacore.
            dimension_semantics=("parallel",),
        ),
        cost_estimate=cost,
    )(x2d, wT, b2d)

    out = out[:M]
    return out.reshape(orig_shape)


if __name__ == "__main__":
    # Small, module-consistent shapes: batch=2, seq=8, hidden=32
    batch, seq, hidden = 2, 8, 32
    key = jax.random.PRNGKey(0)
    kx, kw, kb = jax.random.split(key, 3)

    x = jax.random.normal(kx, (batch, seq, hidden), dtype=jnp.float32)
    # Deterministic nn.Linear-style init (uniform in [-1/sqrt(H), 1/sqrt(H)])
    bound = 1.0 / (hidden ** 0.5)
    weight = jax.random.uniform(kw, (hidden, hidden), jnp.float32, -bound, bound)
    bias = jax.random.uniform(kb, (hidden,), jnp.float32, -bound, bound)

    out = bert_pooler(x, weight, bias)
    out = jax.block_until_ready(out)

    # Reference check in plain JAX (module semantics: dense + tanh on every token)
    ref = jnp.tanh(x @ weight.T + bias)
    assert out.shape == (batch, seq, hidden)
    assert jnp.allclose(out, ref, atol=1e-5, rtol=1e-5)

    print("KERNEL_OK")
</pallas_src>

<mosaic_0001>
module attributes {stable_mosaic.version = 11 : i64} {
  func.func @bert_pooler_kernel(%arg0: i32, %arg1: memref<16x32xf32, #tpu.memory_space<vmem>>, %arg2: memref<32x32xf32, #tpu.memory_space<vmem>>, %arg3: memref<1x32xf32, #tpu.memory_space<vmem>>, %arg4: memref<16x32xf32, #tpu.memory_space<vmem>>) attributes {dimension_semantics = [#tpu.dimension_semantics<parallel>], iteration_bounds = array<i64: 1>, scalar_prefetch = 0 : i64, scratch_operands = 0 : i64, tpu.core_type = #tpu.core_type<tc>, window_params = [{transform_indices = @transform_0, window_bounds = array<i64: 16, 32>}, {pipeline_mode = #tpu.pipeline_mode<synchronous>, transform_indices = @transform_1, window_bounds = array<i64: 32, 32>}, {pipeline_mode = #tpu.pipeline_mode<synchronous>, transform_indices = @transform_2, window_bounds = array<i64: 1, 32>}, {transform_indices = @transform_3, window_bounds = array<i64: 16, 32>}]} {
    %c0 = arith.constant 0 : index
    %c0_0 = arith.constant 0 : index
    %0 = vector.load %arg1[%c0, %c0_0] : memref<16x32xf32, #tpu.memory_space<vmem>>, vector<16x32xf32>
    %c0_1 = arith.constant 0 : index
    %c0_2 = arith.constant 0 : index
    %1 = vector.load %arg2[%c0_1, %c0_2] : memref<32x32xf32, #tpu.memory_space<vmem>>, vector<32x32xf32>
    %cst = arith.constant dense<0.000000e+00> : vector<16x32xf32>
    %2 = tpu.matmul %0, %1, %cst {dimension_numbers = #tpu.dot_dimension_numbers<[1], [0], [0], [1], [0, 0, 1, 1], [], []>} : vector<16x32xf32>, vector<32x32xf32>, vector<16x32xf32> -> vector<16x32xf32>
    %c0_3 = arith.constant 0 : index
    %c0_4 = arith.constant 0 : index
    %3 = vector.load %arg3[%c0_3, %c0_4] : memref<1x32xf32, #tpu.memory_space<vmem>>, vector<1x32xf32>
    %4 = vector.broadcast %3 : vector<1x32xf32> to vector<16x32xf32>
    %5 = arith.addf %2, %4 : vector<16x32xf32>
    %6 = math.tanh %5 : vector<16x32xf32>
    %c0_5 = arith.constant 0 : index
    %c0_6 = arith.constant 0 : index
    %7 = vector.load %arg4[%c0_5, %c0_6] : memref<16x32xf32, #tpu.memory_space<vmem>>, vector<16x32xf32>
    tpu.vector_store %arg4[%c0_5, %c0_6], %6 {strides = array<i32>} : memref<16x32xf32, #tpu.memory_space<vmem>>, vector<16x32xf32>,
    return
  }
  func.func @transform_0(%arg0: i32) -> (i32, i32) {
    %c0_i32 = arith.constant 0 : i32
    %c0_i32_0 = arith.constant 0 : i32
    return %arg0, %c0_i32 : i32, i32
  }
  func.func @transform_1(%arg0: i32) -> (i32, i32) {
    %c0_i32 = arith.constant 0 : i32
    %c0_i32_0 = arith.constant 0 : i32
    %c0_i32_1 = arith.constant 0 : i32
    return %c0_i32, %c0_i32_0 : i32, i32
  }
  func.func @transform_2(%arg0: i32) -> (i32, i32) {
    %c0_i32 = arith.constant 0 : i32
    %c0_i32_0 = arith.constant 0 : i32
    %c0_i32_1 = arith.constant 0 : i32
    return %c0_i32, %c0_i32_0 : i32, i32
  }
  func.func @transform_3(%arg0: i32) -> (i32, i32) {
    %c0_i32 = arith.constant 0 : i32
    %c0_i32_0 = arith.constant 0 : i32
    return %arg0, %c0_i32 : i32, i32
  }
}

</mosaic_0001>

<llo_original>
// kernel: tpu_custom_call.1
$region0: #{tpu_custom_call.1}
  #allocation0 [shape = 'u32[]', space=smem, size = 0x4, offset = 0x4, fixed_abs, tag = 'smem constant byte address 0x4 - core index']
  #allocation1 [shape = 'u32[72,128]{1,0:T(1,128)}', space=vmem, size = 0x9000, scoped, tag = 'internal scratch']
  %s0 = inlined_call_operand.hbm [shape: f32[16,32], index: 0, kind: input, shape index: {}]
  %s1 = inlined_call_operand.hbm [shape: f32[32,32], index: 1, kind: input, shape index: {}]
  %s2 = inlined_call_operand.vmem [shape: f32[1,32], index: 2, kind: input, shape index: {}]
  %s3 = inlined_call_operand.hbm [shape: f32[16,32], index: 3, kind: output, shape index: {}]
  %s4 = sld [smem:[#allocation0]]
  $region30: #{tpu_custom_call.1} parent=0
    _
  %s6 = ssub.s32 1, %s4
  %s7 = scalar_select 0, %s6, %s4
  $region1: #{tpu_custom_call.1} parent=0
    #allocation2 [shape = 'u8[8192]{0}', space=vmem, size = 0x2000, scoped, tag = 'input window, operand 0, single buffered']
    #allocation3 [shape = 's32[1]{0}', space=sflag, size = 0x4, scoped, tag = 'scoped memory for tpu_custom_call.1']
    #allocation4 [shape = 's32[1]{0}', space=sflag, size = 0x4, scoped, tag = 'scoped memory for tpu_custom_call.1']
    #allocation5 [shape = 'u8[16384]{0}', space=vmem, size = 0x4000, scoped, tag = 'input window, operand 1, single buffered']
    #allocation6 [shape = 's32[1]{0}', space=sflag, size = 0x4, scoped, tag = 'scoped memory for tpu_custom_call.1']
    #allocation7 [shape = 'u8[8192]{0}', space=vmem, size = 0x2000, scoped, tag = 'output window, operand 0, single buffered']
    %8 = vsyncpa [#allocation3], 0
    %9 = vsyncpa [#allocation6], 0
    %10 = vsyncpa [#allocation4], 0
    // Predicated region
    $region2: #{tpu_custom_call.1} parent=1 // pred_check
      _
    $region3: #{tpu_custom_call.1} parent=1 // pred_check_branch
      %12 = sbr.rel (0) target = $region5
    $region4: #{tpu_custom_call.1} parent=1 // pred_region
      %14 = vsyncadd [#allocation3], 0
      %s15 = sshll.u32 %s0, 4
      %s16 = int_to_ptr.hbm [resolvable:$true] %s15
      %s17 = sshll.u32 [#allocation2], 4
      %s18 = int_to_ptr.vmem [resolvable:$true] %s17
      %23 = dma.hbm_to_vmem [thread:$0]  %s16, 256, %s18, [#allocation3], 128, 128, 8
    $region5: #{tpu_custom_call.1} parent=1 // pred_fallthru
      _
    // Predicated region
    $region6: #{tpu_custom_call.1} parent=1 // pred_check
      _
    $region7: #{tpu_custom_call.1} parent=1 // pred_check_branch
      %25 = sbr.rel (0) target = $region9
    $region8: #{tpu_custom_call.1} parent=1 // pred_region
      %27 = vsyncadd [#allocation6], 0
      %s28 = sshll.u32 %s1, 4
      %s29 = int_to_ptr.hbm [resolvable:$true] %s28
      %s30 = sshll.u32 [#allocation5], 4
      %s31 = int_to_ptr.vmem [resolvable:$true] %s30
      %36 = dma.hbm_to_vmem [thread:$0]  %s29, 512, %s31, [#allocation6], 128, 128, 8
    $region9: #{tpu_custom_call.1} parent=1 // pred_fallthru
      _
    // Predicated region
    $region10: #{tpu_custom_call.1} parent=1 // pred_check
      _
    $region11: #{tpu_custom_call.1} parent=1 // pred_check_branch
      %38 = sbr.rel (0) target = $region13
    $region12: #{tpu_custom_call.1} parent=1 // pred_region
      _
    $region13: #{tpu_custom_call.1} parent=1 // pred_fallthru
      _
    // Predicated region
    $region14: #{tpu_custom_call.1} parent=1 // pred_check
      _
    $region15: #{tpu_custom_call.1} parent=1 // pred_check_branch
      %40 = sbr.rel (0) target = $region17
    $region16: #{tpu_custom_call.1} parent=1 // pred_region
      %42 = dma.done [#allocation3], 256
    $region17: #{tpu_custom_call.1} parent=1 // pred_fallthru
      _
    // Predicated region
    $region18: #{tpu_custom_call.1} parent=1 // pred_check
      _
    $region19: #{tpu_custom_call.1} parent=1 // pred_check_branch
      %44 = sbr.rel (0) target = $region21
    $region20: #{tpu_custom_call.1} parent=1 // pred_region
      %46 = dma.done [#allocation6], 512
    $region21: #{tpu_custom_call.1} parent=1 // pred_fallthru
      _
    %v47 = vld [vmem:[#allocation2] sm:$0xff]
    %v48 = vld [vmem:[#allocation2 + $0x8] sm:$0xff]
    %v49 = vld [vmem:[#allocation5] sm:$0xff]
    %v50 = vld [vmem:[#allocation5 + $0x8] sm:$0xff]
    %v51 = vld [vmem:[#allocation5 + $0x10] sm:$0xff]
    %v52 = vld [vmem:[#allocation5 + $0x18] sm:$0xff]
    %v53 = vld [vmem:[%s2] sm:$0x1]
    %v55 = vperm.slane %v53, 0
    %vm57 = vcmask 261120
    %v59 = vsel %vm57, %v47, 0
    %v62 = vsel %vm57, %v48, 0
    %64 = vmatpush.msra.mxu0 0.0
    %65 = vmatpush.msra.mxu0 0.0
    %66 = vmatpush.msra.mxu0 0.0
    %67 = vmatpush.msra.mxu0 0.0
    %68 = vmatpush.msra.mxu0 0.0
    %69 = vmatpush.msra.mxu0 0.0
    %70 = vmatpush.msra.mxu0 0.0
    %71 = vmatpush.msra.mxu0 0.0
    %72 = vmatpush.msra.mxu0 0.0
    %73 = vmatpush.msra.mxu0 0.0
    %74 = vmatpush.msra.mxu0 0.0
    %75 = vmatpush.msra.mxu0 0.0
    %76 = vmatpush.msra.mxu0 %v52
    %77 = vmatpush.msra.mxu0 %v51
    %78 = vmatpush.msra.mxu0 %v50
    %79 = vmatpush.msra.mxu0 %v49
    %80 = vmatmul.f32.gmra.mxu0 %v59
    %v81 = vpop.f32.mrf.mxu0
    %v82 = vadd.f32 %v55, %v81
    %83 = vmatmul.f32.gmra.mxu0 %v62
    %v84 = vpop.f32.mrf.mxu0
    %v85 = vadd.f32 %v55, %v84
    %86 = vdwg.mxu0
    %v87 = vtanh.pop %v82
    %v88 = vtanh.pop %v85
    %89 = vst.msk [vmem:[#allocation7] sm:$0xff] %vm57, %v87
    %90 = vst.msk [vmem:[#allocation7 + $0x8] sm:$0xff] %vm57, %v88
    // Predicated region
    $region22: #{tpu_custom_call.1} parent=1 // pred_check
      _
    $region23: #{tpu_custom_call.1} parent=1 // pred_check_branch
      %92 = sbr.rel (0) target = $region25
    $region24: #{tpu_custom_call.1} parent=1 // pred_region
      %94 = vsyncadd [#allocation4], 0
      %s95 = sshll.u32 [#allocation7], 4
      %s96 = int_to_ptr.vmem [resolvable:$true] %s95
      %s97 = sshll.u32 %s3, 4
      %s98 = int_to_ptr.hbm [resolvable:$true] %s97
      %103 = dma.vmem_to_hbm [thread:$0]  %s96, 256, %s98, [#allocation4], 128, 128, 8
    $region25: #{tpu_custom_call.1} parent=1 // pred_fallthru
      _
    // Predicated region
    $region26: #{tpu_custom_call.1} parent=1 // pred_check
      _
    $region27: #{tpu_custom_call.1} parent=1 // pred_check_branch
      %105 = sbr.rel (0) target = $region29
    $region28: #{tpu_custom_call.1} parent=1 // pred_region
      %107 = dma.done [#allocation4], 256
    $region29: #{tpu_custom_call.1} parent=1 // pred_fallthru
      _
    %108 = vsyncpa [#allocation3], 1
    %109 = vsyncpa [#allocation6], 1
    %110 = vsyncpa [#allocation4], 1

</llo_original>
